<compile_context>
chip_gen: v7x
topology: tpu7x:2x2x1
jax: 0.10.0
libtpu: 0.0.40
codegen_flags: <defaults>
</compile_context>

<pallas_src>
import functools

import jax
import jax.numpy as jnp
from jax.experimental import pallas as pl
from jax.experimental.pallas import tpu as pltpu

WIDTH = 8                      # hwcfg['width']
SEQ_LEN = 2 ** WIDTH           # 256
DIMR = 1                       # hwcfg['dimr']

# Runtime mode codes (SMEM scalar) — one Mosaic compile per (width, rtype),
# shared across all supported rng modes.
_MODE_SOBOL = 0   # 'sobol' / 'rc'
_MODE_RACE = 1    # 'race'  / 'tc'
_MODE_RACE10 = 2  # 'race10'/ 'tc10'

_MODE_CODES = {
    'sobol': _MODE_SOBOL, 'rc': _MODE_SOBOL,
    'race': _MODE_RACE, 'tc': _MODE_RACE,
    'race10': _MODE_RACE10, 'tc10': _MODE_RACE10,
}


def _bit_reverse_butterfly(x, width: int):
    """Reverse the low `width` bits of x (width <= 16) via butterfly swaps."""
    x = ((x & 0x5555) << 1) | ((x >> 1) & 0x5555)   # swap adjacent bits
    x = ((x & 0x3333) << 2) | ((x >> 2) & 0x3333)   # swap bit pairs
    x = ((x & 0x0F0F) << 4) | ((x >> 4) & 0x0F0F)   # swap nibbles
    x = ((x & 0x00FF) << 8) | ((x >> 8) & 0x00FF)   # swap bytes
    return x >> (16 - width)


def rng_seq_values(idx, *, width: int, mode: str):
    """In-kernel helper: rng_seq[idx] computed in-register from int32 `idx`.

    Intended for use INSIDE downstream Pallas kernels (bit-stream comparators
    etc.) so consumers regenerate the table with ~13 int32 VALU ops instead of
    taking rng_seq as a DMA'd pallas_call input.
    """
    mode = mode.lower()
    if mode in ('sobol', 'rc'):
        gray = idx ^ (idx >> 1)
        return _bit_reverse_butterfly(gray, width)
    if mode in ('race', 'tc'):
        return idx
    if mode in ('race10', 'tc10'):
        return (2 ** width - 1) - idx
    raise ValueError(f"unsupported rng mode for Pallas kernel: {mode}")


def _rng_seq_kernel(mode_ref, o_ref, *, width: int):
    """Generate the RNG sequence for one (rows, cols) output tile (single block).

    `mode_ref` is an SMEM int32 scalar selecting sobol/race/race10, so a single
    compiled kernel serves every mode for a given (width, rtype).
    """
    rows, cols = o_ref.shape
    row = jax.lax.broadcasted_iota(jnp.int32, (rows, cols), dimension=0)
    col = jax.lax.broadcasted_iota(jnp.int32, (rows, cols), dimension=1)
    idx = row * cols + col                        # lane-dense flat index

    mode = mode_ref[0]
    # All candidates are a handful of int32 VALU ops on <= 512 vregs worth of
    # data; computing all three + two selects is cheaper than a recompile.
    sobol_vals = _bit_reverse_butterfly(idx ^ (idx >> 1), width)
    race_vals = idx
    race10_vals = (2 ** width - 1) - idx

    vals = jnp.where(mode == _MODE_SOBOL, sobol_vals,
                     jnp.where(mode == _MODE_RACE, race_vals, race10_vals))

    # .floor().type(rtype): values are already integral ints; cast only here
    # (keep int32 math internally — v5e has no native bf16 VPU datapath).
    o_ref[...] = vals.astype(o_ref.dtype)


@functools.partial(jax.jit, static_argnames=("width", "rtype_name"))
def _rng_seq_build(mode_arr, *, width: int, rtype_name: str):
    """Single jitted executable: pallas_call + reshape fused (no 2nd dispatch)."""
    rtype = jnp.dtype(rtype_name)
    seq_len = 2 ** width
    # Lane-dense tile: full (rows, 128) vregs whenever possible (width >= 7),
    # so stores are unmasked full-vreg stores; (1, seq_len) only below that.
    if seq_len >= 128:
        tile = (seq_len // 128, 128)
    else:
        tile = (1, seq_len)

    out = pl.pallas_call(
        functools.partial(_rng_seq_kernel, width=width),
        out_shape=jax.ShapeDtypeStruct(tile, rtype),
        grid=(),
        in_specs=[pl.BlockSpec(memory_space=pltpu.MemorySpace.SMEM)],
        out_specs=pl.BlockSpec(tile, lambda: (0, 0)),
    )(mode_arr)
    # forward() returns a 1-D tensor of shape (2**width,); the reshape lives
    # under the same jit/cached computation as the kernel.
    return out.reshape(seq_len)


@functools.lru_cache(maxsize=None)
def _rng_seq_cached(width: int, mode: str, rtype_name: str) -> jax.Array:
    """Build the sequence once per (width, mode, rtype); compile once per
    (width, rtype) since mode is a runtime SMEM scalar."""
    if width > 16:
        raise ValueError("width > 16 not supported")
    if mode not in _MODE_CODES:
        # TODO(synk): 'lfsr' and 'sys' (sequential state walk / host randperm)
        # have no data-parallel Pallas equivalent.
        raise ValueError(f"unsupported rng mode for Pallas kernel: {mode}")
    mode_arr = jnp.array([_MODE_CODES[mode]], dtype=jnp.int32)
    return _rng_seq_build(mode_arr, width=width, rtype_name=rtype_name)


def rng_forward(width: int = WIDTH, rng: str = "sobol",
                rtype=jnp.float32) -> jax.Array:
    """Equivalent of RNG(hwcfg={'width': width, 'dimr': 1, 'rng': rng}).forward()."""
    return _rng_seq_cached(width, rng.lower(), jnp.dtype(rtype).name)


class RNG:
    """JAX/Pallas equivalent of the PyTorch RNG module.

    The sequence is generated once at construction (inside a Pallas kernel,
    cached per config); forward() returns the cached array, matching PyTorch's
    parameter semantics and avoiding any per-forward kernel dispatch.
    """

    def __init__(self, hwcfg=None, swcfg=None):
        hwcfg = dict(hwcfg or {'width': 8, 'dimr': 1, 'rng': 'Sobol'})
        swcfg = dict(swcfg or {'rtype': jnp.float32})
        self.hwcfg = {'width': hwcfg['width'], 'dimr': hwcfg.get('dimr', 1),
                      'rng': hwcfg['rng'].lower()}
        self.swcfg = {'rtype': swcfg.get('rtype', jnp.float32)}
        self.width = self.hwcfg['width']
        self.dimr = self.hwcfg['dimr']
        self.rng = self.hwcfg['rng']
        self.rtype = self.swcfg['rtype']
        # 'lfsr' / 'sys' are intentionally excluded (see TODO above) so callers
        # cannot silently get a wrong sequence.
        assert self.rng in ['sobol', 'race', 'rc', 'tc', 'race10', 'tc10'], (
            "supported Pallas rng modes: sobol/rc/race/tc/race10/tc10 "
            "('lfsr'/'sys' are host-sequential and not implemented)")
        assert self.dimr == 1, "only dimr=1 Sobol dimension is implemented"
        self.seq_len = 2 ** self.width
        self.rng_seq = rng_forward(self.width, self.rng, self.rtype)

    def forward(self):
        return self.rng_seq

    __call__ = forward


def _sobol_dim1_reference(width: int):
    """Pure-python reference for the first Sobol dimension (times 2**width)."""
    seq_len = 2 ** width
    out = []
    for i in range(seq_len):
        g = i ^ (i >> 1)
        r = 0
        for b in range(width):
            r |= ((g >> b) & 1) << (width - 1 - b)
        out.append(float(r))
    return out


if __name__ == "__main__":
    # forward() takes no tensor inputs; key kept for interface consistency.
    _ = jax.random.PRNGKey(0)

    # default config: width=8, dimr=1, rng='Sobol', rtype=float32
    mod = RNG(hwcfg={'width': WIDTH, 'dimr': DIMR, 'rng': 'Sobol'},
              swcfg={'rtype': jnp.float32})
    seq = jax.block_until_ready(mod.forward())

    assert seq.shape == (SEQ_LEN,) and seq.dtype == jnp.float32
    ref = jnp.asarray(_sobol_dim1_reference(WIDTH), dtype=jnp.float32)
    assert jnp.array_equal(seq, ref), "Sobol sequence mismatch (width=8)"

    # forward() is a cached read — same object, no extra dispatch.
    assert mod.forward() is seq

    # 'race' / 'race10' reuse the SAME compiled executable (mode is a runtime
    # SMEM scalar), only the cached array differs.
    race = jax.block_until_ready(rng_forward(WIDTH, "race"))
    race10 = jax.block_until_ready(rng_forward(WIDTH, "race10"))
    assert jnp.array_equal(race, jnp.arange(SEQ_LEN, dtype=jnp.float32))
    assert jnp.array_equal(race10, jnp.arange(SEQ_LEN - 1, -1, -1,
                                              dtype=jnp.float32))

    # exercise a larger lane-dense tile path (width=10 -> (8, 128) tile)
    seq10 = jax.block_until_ready(rng_forward(10, "sobol"))
    ref10 = jnp.asarray(_sobol_dim1_reference(10), dtype=jnp.float32)
    assert jnp.array_equal(seq10, ref10), "Sobol sequence mismatch (width=10)"

    # exercise the small-width (block == full array) path (width=6 -> (1, 64))
    seq6 = jax.block_until_ready(rng_forward(6, "sobol"))
    ref6 = jnp.asarray(_sobol_dim1_reference(6), dtype=jnp.float32)
    assert jnp.array_equal(seq6, ref6), "Sobol sequence mismatch (width=6)"

    # in-kernel helper matches the table (for downstream consumer kernels)
    idx = jnp.arange(SEQ_LEN, dtype=jnp.int32)
    regen = rng_seq_values(idx, width=WIDTH, mode="sobol").astype(jnp.float32)
    assert jnp.array_equal(regen, ref), "in-register regeneration mismatch"

    print("KERNEL_OK")
</pallas_src>

<mosaic_0001>
module attributes {stable_mosaic.version = 11 : i64} {
  func.func @_rng_seq_kernel(%arg0: memref<1xi32, #tpu.memory_space<smem>>, %arg1: memref<2x128xf32, #tpu.memory_space<vmem>>) attributes {dimension_semantics = [], scalar_prefetch = 0 : i64, scratch_operands = 0 : i64, tpu.core_type = #tpu.core_type<tc>} {
    %0 = tpu.iota {dimensions = array<i32: 0>} : vector<2x128xi32>
    %1 = tpu.iota {dimensions = array<i32: 1>} : vector<2x128xi32>
    %c128_i32 = arith.constant 128 : i32
    %2 = vector.broadcast %c128_i32 : i32 to vector<2x128xi32>
    %3 = arith.muli %0, %2 : vector<2x128xi32>
    %4 = arith.addi %3, %1 : vector<2x128xi32>
    %c0 = arith.constant 0 : index
    %5 = memref.load %arg0[%c0] : memref<1xi32, #tpu.memory_space<smem>>
    %c1_i32 = arith.constant 1 : i32
    %6 = vector.broadcast %c1_i32 : i32 to vector<2x128xi32>
    %7 = arith.shrsi %4, %6 : vector<2x128xi32>
    %8 = arith.xori %4, %7 : vector<2x128xi32>
    %c21845_i32 = arith.constant 21845 : i32
    %9 = vector.broadcast %c21845_i32 : i32 to vector<2x128xi32>
    %10 = arith.andi %8, %9 : vector<2x128xi32>
    %c1_i32_0 = arith.constant 1 : i32
    %11 = vector.broadcast %c1_i32_0 : i32 to vector<2x128xi32>
    %12 = arith.shli %10, %11 : vector<2x128xi32>
    %c1_i32_1 = arith.constant 1 : i32
    %13 = vector.broadcast %c1_i32_1 : i32 to vector<2x128xi32>
    %14 = arith.shrsi %8, %13 : vector<2x128xi32>
    %c21845_i32_2 = arith.constant 21845 : i32
    %15 = vector.broadcast %c21845_i32_2 : i32 to vector<2x128xi32>
    %16 = arith.andi %14, %15 : vector<2x128xi32>
    %17 = arith.ori %12, %16 : vector<2x128xi32>
    %c13107_i32 = arith.constant 13107 : i32
    %18 = vector.broadcast %c13107_i32 : i32 to vector<2x128xi32>
    %19 = arith.andi %17, %18 : vector<2x128xi32>
    %c2_i32 = arith.constant 2 : i32
    %20 = vector.broadcast %c2_i32 : i32 to vector<2x128xi32>
    %21 = arith.shli %19, %20 : vector<2x128xi32>
    %c2_i32_3 = arith.constant 2 : i32
    %22 = vector.broadcast %c2_i32_3 : i32 to vector<2x128xi32>
    %23 = arith.shrsi %17, %22 : vector<2x128xi32>
    %c13107_i32_4 = arith.constant 13107 : i32
    %24 = vector.broadcast %c13107_i32_4 : i32 to vector<2x128xi32>
    %25 = arith.andi %23, %24 : vector<2x128xi32>
    %26 = arith.ori %21, %25 : vector<2x128xi32>
    %c3855_i32 = arith.constant 3855 : i32
    %27 = vector.broadcast %c3855_i32 : i32 to vector<2x128xi32>
    %28 = arith.andi %26, %27 : vector<2x128xi32>
    %c4_i32 = arith.constant 4 : i32
    %29 = vector.broadcast %c4_i32 : i32 to vector<2x128xi32>
    %30 = arith.shli %28, %29 : vector<2x128xi32>
    %c4_i32_5 = arith.constant 4 : i32
    %31 = vector.broadcast %c4_i32_5 : i32 to vector<2x128xi32>
    %32 = arith.shrsi %26, %31 : vector<2x128xi32>
    %c3855_i32_6 = arith.constant 3855 : i32
    %33 = vector.broadcast %c3855_i32_6 : i32 to vector<2x128xi32>
    %34 = arith.andi %32, %33 : vector<2x128xi32>
    %35 = arith.ori %30, %34 : vector<2x128xi32>
    %c255_i32 = arith.constant 255 : i32
    %36 = vector.broadcast %c255_i32 : i32 to vector<2x128xi32>
    %37 = arith.andi %35, %36 : vector<2x128xi32>
    %c8_i32 = arith.constant 8 : i32
    %38 = vector.broadcast %c8_i32 : i32 to vector<2x128xi32>
    %39 = arith.shli %37, %38 : vector<2x128xi32>
    %c8_i32_7 = arith.constant 8 : i32
    %40 = vector.broadcast %c8_i32_7 : i32 to vector<2x128xi32>
    %41 = arith.shrsi %35, %40 : vector<2x128xi32>
    %c255_i32_8 = arith.constant 255 : i32
    %42 = vector.broadcast %c255_i32_8 : i32 to vector<2x128xi32>
    %43 = arith.andi %41, %42 : vector<2x128xi32>
    %44 = arith.ori %39, %43 : vector<2x128xi32>
    %c8_i32_9 = arith.constant 8 : i32
    %45 = vector.broadcast %c8_i32_9 : i32 to vector<2x128xi32>
    %46 = arith.shrsi %44, %45 : vector<2x128xi32>
    %c255_i32_10 = arith.constant 255 : i32
    %47 = vector.broadcast %c255_i32_10 : i32 to vector<2x128xi32>
    %48 = arith.subi %47, %4 : vector<2x128xi32>
    %c0_i32 = arith.constant 0 : i32
    %49 = arith.cmpi eq, %5, %c0_i32 : i32
    %c1_i32_11 = arith.constant 1 : i32
    %50 = arith.cmpi eq, %5, %c1_i32_11 : i32
    %51 = arith.select %50, %4, %48 : vector<2x128xi32>
    %52 = arith.select %49, %46, %51 : vector<2x128xi32>
    %53 = arith.sitofp %52 : vector<2x128xi32> to vector<2x128xf32>
    %c0_12 = arith.constant 0 : index
    %c0_13 = arith.constant 0 : index
    %54 = vector.load %arg1[%c0_12, %c0_13] : memref<2x128xf32, #tpu.memory_space<vmem>>, vector<2x128xf32>
    tpu.vector_store %arg1[%c0_12, %c0_13], %53 {strides = array<i32>} : memref<2x128xf32, #tpu.memory_space<vmem>>, vector<2x128xf32>,
    return
  }
}

</mosaic_0001>

<llo_original>
// kernel: _rng_seq_build.1
$region0: #{_rng_seq_build.1}
  #allocation0 [shape = 'u32[]', space=smem, size = 0x4, offset = 0x4, fixed_abs, tag = 'smem constant byte address 0x4 - core index']
  #allocation1 [shape = 'u32[144,128]{1,0:T(1,128)}', space=vmem, size = 0x12000, scoped, tag = 'internal scratch']
  #allocation2 [shape = 's32[1]{0:T(128)S(6)}', space=smem, size = 0x200, scoped, tag = 'scoped memory for _rng_seq_build.1']
  %s0 = inlined_call_operand.<no memory space> [shape: s32[1], index: 0, kind: input, shape index: {}]
  %s1 = inlined_call_operand.hbm [shape: f32[2,128], index: 1, kind: output, shape index: {}]
  %s2 = sld [smem:[#allocation0]]
  $region14: #{_rng_seq_build.1} parent=0
    _
  %s4 = ssub.s32 1, %s2
  %s5 = scalar_select 0, %s4, %s2
  %6 = sst [smem:[#allocation2]] %s0
  $region1: #{_rng_seq_build.1} parent=0
    #allocation3 [shape = 'u8[1024]{0}', space=vmem, size = 0x400, scoped, tag = 'output window, operand 0, single buffered']
    #allocation4 [shape = 's32[1]{0}', space=sflag, size = 0x4, scoped, tag = 'scoped memory for _rng_seq_build.1']
    %7 = vsyncpa [#allocation4], 0
    // Predicated region
    $region2: #{_rng_seq_build.1} parent=1 // pred_check
      _
    $region3: #{_rng_seq_build.1} parent=1 // pred_check_branch
      %9 = sbr.rel (0) target = $region5
    $region4: #{_rng_seq_build.1} parent=1 // pred_region
      _
    $region5: #{_rng_seq_build.1} parent=1 // pred_fallthru
      _
    %v10 = vlaneseq
    %v11 = vshrl.u32 %v10, 7
    %v12 = vlaneseq
    %v13 = vand.u32 %v12, 127
    %v14 = vmul.u32 %v11, 128
    %v15 = vadd.s32 %v14, %v13
    %s16 = sld [smem:[#allocation2]]
    %v17 = vshra.s32 %v15, 1
    %v18 = vxor.u32 %v15, %v17
    %v19 = vand.u32 %v18, 21845
    %v20 = vshll.u32 %v19, 1
    %v21 = vshra.s32 %v18, 1
    %v22 = vand.u32 %v21, 21845
    %v23 = vor.u32 %v20, %v22
    %v24 = vand.u32 %v23, 13107
    %v25 = vshll.u32 %v24, 2
    %v26 = vshra.s32 %v23, 2
    %v27 = vand.u32 %v26, 13107
    %v28 = vor.u32 %v25, %v27
    %v29 = vand.u32 %v28, 3855
    %v30 = vshll.u32 %v29, 4
    %v31 = vshra.s32 %v28, 4
    %v32 = vand.u32 %v31, 3855
    %v33 = vor.u32 %v30, %v32
    %v34 = vand.u32 %v33, 255
    %v35 = vshll.u32 %v34, 8
    %v36 = vshra.s32 %v33, 8
    %v37 = vand.u32 %v36, 255
    %v38 = vor.u32 %v35, %v37
    %v39 = vshra.s32 %v38, 8
    %v40 = vsub.s32 255, %v15
    %p41 = scmp.eq.s32.totalorder %s16, 0
    %p42 = scmp.eq.s32.totalorder %s16, 1
    %s43 = scalar_select %p42, 1, 0
    %v44 = vstv %s43
    %vm45 = vcmp.eq.s32.totalorder %v44, 1
    %v46 = vsel %vm45, %v15, %v40
    %s47 = scalar_select %p41, 1, 0
    %v48 = vstv %s47
    %vm49 = vcmp.eq.s32.totalorder %v48, 1
    %v50 = vsel %vm49, %v39, %v46
    %v51 = vcvt.s32.f32 %v50
    %52 = vst [vmem:[#allocation3] sm:$0x3] %v51
    // Predicated region
    $region6: #{_rng_seq_build.1} parent=1 // pred_check
      _
    $region7: #{_rng_seq_build.1} parent=1 // pred_check_branch
      %54 = sbr.rel (0) target = $region9
    $region8: #{_rng_seq_build.1} parent=1 // pred_region
      %s56 = ssub.s32 32, 32
      %57 = vsyncadd [#allocation4], %s56
      %s59 = sshll.u32 [#allocation3], 4
      %s60 = int_to_ptr.vmem [resolvable:$true] %s59
      %62 = dma.vmem_to_hbm [thread:$0]  %s60, 32, %s1, [#allocation4]
    $region9: #{_rng_seq_build.1} parent=1 // pred_fallthru
      _
    // Predicated region
    $region10: #{_rng_seq_build.1} parent=1 // pred_check
      _
    $region11: #{_rng_seq_build.1} parent=1 // pred_check_branch
      %64 = sbr.rel (0) target = $region13
    $region12: #{_rng_seq_build.1} parent=1 // pred_region
      %65 = dma.done [#allocation4], 32
    $region13: #{_rng_seq_build.1} parent=1 // pred_fallthru
      _
    %66 = vsyncpa [#allocation4], 1

</llo_original>
